<compile_context>
chip_gen: v7x
topology: tpu7x:2x2x1
jax: 0.10.0
libtpu: 0.0.40
codegen_flags: <defaults>
</compile_context>

<pallas_src>
import functools

import jax
import jax.numpy as jnp
from jax import lax
from jax.experimental import pallas as pl
from jax.experimental.pallas import tpu as pltpu


# ---------------------------------------------------------------------------
# Path A: several whole (h, w) channel planes per grid step (small planes).
# ---------------------------------------------------------------------------
def _tv_packed_kernel(x_ref, o_ref, *, num_planes):
    # x_ref: (P, h, w) block of x viewed as (b*c, h, w)
    # o_ref: (1, 1)    unnormalized partial TV sum for these P planes
    total = jnp.zeros((1, 1), jnp.float32)
    for p in range(num_planes):               # static unroll; P is small (<=64)
        xp = x_ref[p].astype(jnp.float32)     # (h, w)
        hd = xp[1:, :] - xp[:-1, :]
        wd = xp[:, 1:] - xp[:, :-1]
        total = (total
                 + jnp.sum(hd * hd, keepdims=True)
                 + jnp.sum(wd * wd, keepdims=True))
    o_ref[...] = total


# ---------------------------------------------------------------------------
# Path B: stream (th, w) row tiles of one plane per grid step (large planes).
# ---------------------------------------------------------------------------
def _tv_rowtiled_kernel(x_ref, o_ref, accv_ref, accw_ref, carry_ref, *,
                        h, th, needs_mask):
    # x_ref:     (1, th, w) tile of plane pl.program_id(0)
    # o_ref:     (1, 1)     per-plane unnormalized TV sum (written on last tile)
    # accv_ref:  (1, w)     f32 lane accumulator, vertical squared diffs
    # accw_ref:  (1, w-1)   f32 lane accumulator, horizontal squared diffs
    # carry_ref: (1, w)     f32 last row of the previous tile (same plane)
    t = pl.program_id(1)

    @pl.when(t == 0)
    def _init():
        accv_ref[...] = jnp.zeros_like(accv_ref)
        accw_ref[...] = jnp.zeros_like(accw_ref)

    x = x_ref[0].astype(jnp.float32)                              # (th, w)

    # Vertical diffs inside this tile via sublane-shifted Ref loads (no
    # register re-tiling through the XLU): row r+1 minus row r, r in [0, th-1).
    xa = x_ref[0, pl.ds(1, th - 1), :].astype(jnp.float32)        # rows 1..th-1
    xb = x_ref[0, pl.ds(0, th - 1), :].astype(jnp.float32)        # rows 0..th-2
    hd = xa - xb                                                  # (th-1, w)

    # Horizontal diffs (the lane shift is unavoidable).
    wd = x[:, 1:] - x[:, :-1]                                     # (th, w-1)

    if needs_mask:
        # Only compiled in when th does not divide h (partial last row tile).
        row_start = t * th
        row_ids = row_start + lax.broadcasted_iota(jnp.int32, (th, 1), 0)
        wd = jnp.where(row_ids < h, wd, 0.0)
        pair_ids = row_start + 1 + lax.broadcasted_iota(jnp.int32, (th - 1, 1), 0)
        hd = jnp.where(pair_ids < h, hd, 0.0)

    # Sublane-only folds (mostly VALU); lanes stay resident in the vector
    # accumulators so the expensive cross-lane reduce happens once per plane.
    accv_ref[...] += jnp.sum(hd * hd, axis=0, keepdims=True)      # (1, w)
    accw_ref[...] += jnp.sum(wd * wd, axis=0, keepdims=True)      # (1, w-1)

    # Vertical diff across the tile boundary (previous tile's last row).
    @pl.when(t > 0)
    def _cross():
        d0 = x[0:1, :] - carry_ref[...]
        accv_ref[...] += d0 * d0

    # Carry this tile's last row for the next tile of the same plane (only
    # consumed when a next tile exists, in which case this row is valid).
    carry_ref[...] = x_ref[0, pl.ds(th - 1, 1), :].astype(jnp.float32)

    # Single cross-lane reduction + output write, only on the last row tile.
    @pl.when(t == pl.num_programs(1) - 1)
    def _final():
        o_ref[...] = (jnp.sum(accv_ref[...], keepdims=True)
                      + jnp.sum(accw_ref[...], keepdims=True))


# ---------------------------------------------------------------------------
# Wrapper
# ---------------------------------------------------------------------------
def _sublane_multiple(itemsize):
    # 8 rows for 4-byte dtypes, 16 for 2-byte, 32 for 1-byte (sublane packing).
    return max(8, 32 // itemsize)


def _pick_tile_rows(h, w, itemsize, per_buffer_bytes):
    """Largest row tile (dtype sublane multiple, or full h) within the budget."""
    sub = _sublane_multiple(itemsize)
    th = per_buffer_bytes // max(1, w * itemsize)
    th = max(sub, (th // sub) * sub)
    return h if th >= h else th


def tv_loss(x, *, tile_rows=None,
            per_buffer_bytes=2 * 1024 * 1024,     # ~HBM roofline knee, v7x-safe
            pack_threshold_bytes=512 * 1024):
    """Total-variation loss of x: float tensor [b, c, h, w] -> scalar []."""
    b, c, h, w = x.shape
    bc = b * c
    n = b * c * h * w
    itemsize = jnp.dtype(x.dtype).itemsize
    plane_bytes = h * w * itemsize
    x3 = x.reshape(bc, h, w)

    cost = pl.CostEstimate(flops=6 * n, transcendentals=0,
                           bytes_accessed=itemsize * n + 4 * bc)

    if tile_rows is None and plane_bytes <= pack_threshold_bytes:
        # ---- Packed path: several whole planes per grid step ----
        p_cap = int(max(1, min(bc, per_buffer_bytes // max(1, plane_bytes), 64)))
        num_planes = 1
        for d in range(p_cap, 0, -1):
            if bc % d == 0:
                num_planes = d
                break
        n_groups = bc // num_planes
        partials = pl.pallas_call(
            functools.partial(_tv_packed_kernel, num_planes=num_planes),
            out_shape=jax.ShapeDtypeStruct((n_groups, 1), jnp.float32),
            grid_spec=pltpu.PrefetchScalarGridSpec(
                num_scalar_prefetch=0,
                grid=(n_groups,),
                in_specs=[pl.BlockSpec((num_planes, h, w), lambda g: (g, 0, 0))],
                out_specs=pl.BlockSpec((1, 1), lambda g: (g, 0)),
            ),
            compiler_params=pltpu.CompilerParams(
                dimension_semantics=("parallel",),
                vmem_limit_bytes=32 * 1024 * 1024,
            ),
            cost_estimate=cost,
        )(x3)
    else:
        # ---- Row-tiled path: stream (th, w) row tiles of each plane ----
        if tile_rows is None:
            th = _pick_tile_rows(h, w, itemsize, per_buffer_bytes)
        else:
            th = min(int(tile_rows), h)
        n_t = pl.cdiv(h, th)
        needs_mask = (h % th) != 0
        kernel = functools.partial(_tv_rowtiled_kernel, h=h, th=th,
                                   needs_mask=needs_mask)
        partials = pl.pallas_call(
            kernel,
            out_shape=jax.ShapeDtypeStruct((bc, 1), jnp.float32),
            grid_spec=pltpu.PrefetchScalarGridSpec(
                num_scalar_prefetch=0,
                grid=(bc, n_t),
                in_specs=[pl.BlockSpec((1, th, w), lambda i, t: (i, t, 0))],
                out_specs=pl.BlockSpec((1, 1), lambda i, t: (i, 0)),
                scratch_shapes=[
                    pltpu.VMEM((1, w), jnp.float32),      # vertical lane acc
                    pltpu.VMEM((1, w - 1), jnp.float32),  # horizontal lane acc
                    pltpu.VMEM((1, w), jnp.float32),      # carried boundary row
                ],
            ),
            compiler_params=pltpu.CompilerParams(
                # Planes are independent ("parallel" -> v7x megacore sharding);
                # the row-tile axis stays sequential for the carry/accumulators.
                dimension_semantics=("parallel", "arbitrary"),
                vmem_limit_bytes=32 * 1024 * 1024,
            ),
            cost_estimate=cost,
        )(x3)

    return jnp.sum(partials) * (1.0 / float(n))


def _tv_loss_ref(x):
    b, c, h, w = x.shape
    xf = x.astype(jnp.float32)
    h_tv = jnp.sum((xf[:, :, 1:, :] - xf[:, :, :-1, :]) ** 2)
    w_tv = jnp.sum((xf[:, :, :, 1:] - xf[:, :, :, :-1]) ** 2)
    return (h_tv + w_tv) / (b * c * h * w)


if __name__ == "__main__":
    key = jax.random.PRNGKey(0)
    k1, k2, k3 = jax.random.split(key, 3)

    # Test 1: the module's nominal shape [b, 3, h, w] at a small size.
    # Exercises the packed-planes path (one grid step streaming all 6 planes).
    b, c, h, w = 2, 3, 16, 16
    x = jax.random.uniform(k1, (b, c, h, w), dtype=jnp.float32)  # pixels in [0, 1]
    out = tv_loss(x)
    jax.block_until_ready(out)
    ref = _tv_loss_ref(x)
    assert out.shape == ()
    assert jnp.allclose(out, ref, rtol=1e-5, atol=1e-6), "mismatch vs reference (test 1)"

    # Test 2: force the row-tiled path: cross-tile carry, masked partial last
    # tile (h not a multiple of the tile), non-128 width, per-plane partials.
    b2, c2, h2, w2 = 1, 3, 20, 144
    x2 = jax.random.uniform(k2, (b2, c2, h2, w2), dtype=jnp.float32)
    out2 = tv_loss(x2, tile_rows=8)   # 3 row tiles per plane, last one partial
    jax.block_until_ready(out2)
    ref2 = _tv_loss_ref(x2)
    assert jnp.allclose(out2, ref2, rtol=1e-5, atol=1e-6), "mismatch vs reference (test 2)"

    # Test 3: bf16 input (dtype-aware sizing + in-kernel f32 upcast).
    x3 = jax.random.uniform(k3, (b, c, h, w), dtype=jnp.float32).astype(jnp.bfloat16)
    out3 = tv_loss(x3)
    jax.block_until_ready(out3)
    ref3 = _tv_loss_ref(x3)
    assert jnp.allclose(out3, ref3, rtol=1e-4, atol=1e-5), "mismatch vs reference (test 3)"

    print("KERNEL_OK")
</pallas_src>

<mosaic_0001>
module attributes {stable_mosaic.version = 11 : i64} {
  func.func @_tv_packed_kernel(%arg0: i32, %arg1: memref<6x16x16xf32, #tpu.memory_space<vmem>>, %arg2: memref<1x1xf32, #tpu.memory_space<vmem>>) attributes {dimension_semantics = [#tpu.dimension_semantics<parallel>], iteration_bounds = array<i64: 1>, scalar_prefetch = 0 : i64, scratch_operands = 0 : i64, tpu.core_type = #tpu.core_type<tc>, window_params = [{transform_indices = @transform_0, window_bounds = array<i64: 6, 16, 16>}, {transform_indices = @transform_1, window_bounds = array<i64: 1, 1>}]} {
    %cst = arith.constant 0.000000e+00 : f32
    %0 = vector.broadcast %cst : f32 to vector<1x1xf32>
    %c0 = arith.constant 0 : index
    %c0_0 = arith.constant 0 : index
    %c0_1 = arith.constant 0 : index
    %1 = vector.load %arg1[%c0, %c0_0, %c0_1] : memref<6x16x16xf32, #tpu.memory_space<vmem>>, vector<1x16x16xf32>
    %2 = vector.shape_cast %1 : vector<1x16x16xf32> to vector<16x16xf32>
    %3 = vector.extract_strided_slice %2 {offsets = [1, 0], sizes = [15, 16], strides = [1, 1]} : vector<16x16xf32> to vector<15x16xf32>
    %4 = vector.extract_strided_slice %2 {offsets = [0, 0], sizes = [15, 16], strides = [1, 1]} : vector<16x16xf32> to vector<15x16xf32>
    %5 = arith.subf %3, %4 : vector<15x16xf32>
    %6 = vector.extract_strided_slice %2 {offsets = [0, 1], sizes = [16, 15], strides = [1, 1]} : vector<16x16xf32> to vector<16x15xf32>
    %7 = vector.extract_strided_slice %2 {offsets = [0, 0], sizes = [16, 15], strides = [1, 1]} : vector<16x16xf32> to vector<16x15xf32>
    %8 = arith.subf %6, %7 : vector<16x15xf32>
    %9 = arith.mulf %5, %5 : vector<15x16xf32>
    %10 = vector.shape_cast %9 : vector<15x16xf32> to vector<1x15x16xf32>
    %cst_2 = arith.constant dense<0.000000e+00> : vector<1xf32>
    %11 = vector.multi_reduction <add>, %10, %cst_2 [1, 2] : vector<1x15x16xf32> to vector<1xf32>
    %12 = vector.shape_cast %11 : vector<1xf32> to vector<1x1x1xf32>
    %13 = vector.extract %12[0, 0, 0] : f32 from vector<1x1x1xf32>
    %14 = vector.broadcast %13 : f32 to vector<1x1xf32>
    %15 = arith.addf %0, %14 : vector<1x1xf32>
    %16 = arith.mulf %8, %8 : vector<16x15xf32>
    %17 = vector.shape_cast %16 : vector<16x15xf32> to vector<1x16x15xf32>
    %cst_3 = arith.constant dense<0.000000e+00> : vector<1xf32>
    %18 = vector.multi_reduction <add>, %17, %cst_3 [1, 2] : vector<1x16x15xf32> to vector<1xf32>
    %19 = vector.shape_cast %18 : vector<1xf32> to vector<1x1x1xf32>
    %20 = vector.extract %19[0, 0, 0] : f32 from vector<1x1x1xf32>
    %21 = vector.broadcast %20 : f32 to vector<1x1xf32>
    %22 = arith.addf %15, %21 : vector<1x1xf32>
    %c1 = arith.constant 1 : index
    %c0_4 = arith.constant 0 : index
    %c0_5 = arith.constant 0 : index
    %23 = vector.load %arg1[%c1, %c0_4, %c0_5] : memref<6x16x16xf32, #tpu.memory_space<vmem>>, vector<1x16x16xf32>
    %24 = vector.shape_cast %23 : vector<1x16x16xf32> to vector<16x16xf32>
    %25 = vector.extract_strided_slice %24 {offsets = [1, 0], sizes = [15, 16], strides = [1, 1]} : vector<16x16xf32> to vector<15x16xf32>
    %26 = vector.extract_strided_slice %24 {offsets = [0, 0], sizes = [15, 16], strides = [1, 1]} : vector<16x16xf32> to vector<15x16xf32>
    %27 = arith.subf %25, %26 : vector<15x16xf32>
    %28 = vector.extract_strided_slice %24 {offsets = [0, 1], sizes = [16, 15], strides = [1, 1]} : vector<16x16xf32> to vector<16x15xf32>
    %29 = vector.extract_strided_slice %24 {offsets = [0, 0], sizes = [16, 15], strides = [1, 1]} : vector<16x16xf32> to vector<16x15xf32>
    %30 = arith.subf %28, %29 : vector<16x15xf32>
    %31 = arith.mulf %27, %27 : vector<15x16xf32>
    %32 = vector.shape_cast %31 : vector<15x16xf32> to vector<1x15x16xf32>
    %cst_6 = arith.constant dense<0.000000e+00> : vector<1xf32>
    %33 = vector.multi_reduction <add>, %32, %cst_6 [1, 2] : vector<1x15x16xf32> to vector<1xf32>
    %34 = vector.shape_cast %33 : vector<1xf32> to vector<1x1x1xf32>
    %35 = vector.extract %34[0, 0, 0] : f32 from vector<1x1x1xf32>
    %36 = vector.broadcast %35 : f32 to vector<1x1xf32>
    %37 = arith.addf %22, %36 : vector<1x1xf32>
    %38 = arith.mulf %30, %30 : vector<16x15xf32>
    %39 = vector.shape_cast %38 : vector<16x15xf32> to vector<1x16x15xf32>
    %cst_7 = arith.constant dense<0.000000e+00> : vector<1xf32>
    %40 = vector.multi_reduction <add>, %39, %cst_7 [1, 2] : vector<1x16x15xf32> to vector<1xf32>
    %41 = vector.shape_cast %40 : vector<1xf32> to vector<1x1x1xf32>
    %42 = vector.extract %41[0, 0, 0] : f32 from vector<1x1x1xf32>
    %43 = vector.broadcast %42 : f32 to vector<1x1xf32>
    %44 = arith.addf %37, %43 : vector<1x1xf32>
    %c2 = arith.constant 2 : index
    %c0_8 = arith.constant 0 : index
    %c0_9 = arith.constant 0 : index
    %45 = vector.load %arg1[%c2, %c0_8, %c0_9] : memref<6x16x16xf32, #tpu.memory_space<vmem>>, vector<1x16x16xf32>
    %46 = vector.shape_cast %45 : vector<1x16x16xf32> to vector<16x16xf32>
    %47 = vector.extract_strided_slice %46 {offsets = [1, 0], sizes = [15, 16], strides = [1, 1]} : vector<16x16xf32> to vector<15x16xf32>
    %48 = vector.extract_strided_slice %46 {offsets = [0, 0], sizes = [15, 16], strides = [1, 1]} : vector<16x16xf32> to vector<15x16xf32>
    %49 = arith.subf %47, %48 : vector<15x16xf32>
    %50 = vector.extract_strided_slice %46 {offsets = [0, 1], sizes = [16, 15], strides = [1, 1]} : vector<16x16xf32> to vector<16x15xf32>
    %51 = vector.extract_strided_slice %46 {offsets = [0, 0], sizes = [16, 15], strides = [1, 1]} : vector<16x16xf32> to vector<16x15xf32>
    %52 = arith.subf %50, %51 : vector<16x15xf32>
    %53 = arith.mulf %49, %49 : vector<15x16xf32>
    %54 = vector.shape_cast %53 : vector<15x16xf32> to vector<1x15x16xf32>
    %cst_10 = arith.constant dense<0.000000e+00> : vector<1xf32>
    %55 = vector.multi_reduction <add>, %54, %cst_10 [1, 2] : vector<1x15x16xf32> to vector<1xf32>
    %56 = vector.shape_cast %55 : vector<1xf32> to vector<1x1x1xf32>
    %57 = vector.extract %56[0, 0, 0] : f32 from vector<1x1x1xf32>
    %58 = vector.broadcast %57 : f32 to vector<1x1xf32>
    %59 = arith.addf %44, %58 : vector<1x1xf32>
    %60 = arith.mulf %52, %52 : vector<16x15xf32>
    %61 = vector.shape_cast %60 : vector<16x15xf32> to vector<1x16x15xf32>
    %cst_11 = arith.constant dense<0.000000e+00> : vector<1xf32>
    %62 = vector.multi_reduction <add>, %61, %cst_11 [1, 2] : vector<1x16x15xf32> to vector<1xf32>
    %63 = vector.shape_cast %62 : vector<1xf32> to vector<1x1x1xf32>
    %64 = vector.extract %63[0, 0, 0] : f32 from vector<1x1x1xf32>
    %65 = vector.broadcast %64 : f32 to vector<1x1xf32>
    %66 = arith.addf %59, %65 : vector<1x1xf32>
    %c3 = arith.constant 3 : index
    %c0_12 = arith.constant 0 : index
    %c0_13 = arith.constant 0 : index
    %67 = vector.load %arg1[%c3, %c0_12, %c0_13] : memref<6x16x16xf32, #tpu.memory_space<vmem>>, vector<1x16x16xf32>
    %68 = vector.shape_cast %67 : vector<1x16x16xf32> to vector<16x16xf32>
    %69 = vector.extract_strided_slice %68 {offsets = [1, 0], sizes = [15, 16], strides = [1, 1]} : vector<16x16xf32> to vector<15x16xf32>
    %70 = vector.extract_strided_slice %68 {offsets = [0, 0], sizes = [15, 16], strides = [1, 1]} : vector<16x16xf32> to vector<15x16xf32>
    %71 = arith.subf %69, %70 : vector<15x16xf32>
    %72 = vector.extract_strided_slice %68 {offsets = [0, 1], sizes = [16, 15], strides = [1, 1]} : vector<16x16xf32> to vector<16x15xf32>
    %73 = vector.extract_strided_slice %68 {offsets = [0, 0], sizes = [16, 15], strides = [1, 1]} : vector<16x16xf32> to vector<16x15xf32>
    %74 = arith.subf %72, %73 : vector<16x15xf32>
    %75 = arith.mulf %71, %71 : vector<15x16xf32>
    %76 = vector.shape_cast %75 : vector<15x16xf32> to vector<1x15x16xf32>
    %cst_14 = arith.constant dense<0.000000e+00> : vector<1xf32>
    %77 = vector.multi_reduction <add>, %76, %cst_14 [1, 2] : vector<1x15x16xf32> to vector<1xf32>
    %78 = vector.shape_cast %77 : vector<1xf32> to vector<1x1x1xf32>
    %79 = vector.extract %78[0, 0, 0] : f32 from vector<1x1x1xf32>
    %80 = vector.broadcast %79 : f32 to vector<1x1xf32>
    %81 = arith.addf %66, %80 : vector<1x1xf32>
    %82 = arith.mulf %74, %74 : vector<16x15xf32>
    %83 = vector.shape_cast %82 : vector<16x15xf32> to vector<1x16x15xf32>
    %cst_15 = arith.constant dense<0.000000e+00> : vector<1xf32>
    %84 = vector.multi_reduction <add>, %83, %cst_15 [1, 2] : vector<1x16x15xf32> to vector<1xf32>
    %85 = vector.shape_cast %84 : vector<1xf32> to vector<1x1x1xf32>
    %86 = vector.extract %85[0, 0, 0] : f32 from vector<1x1x1xf32>
    %87 = vector.broadcast %86 : f32 to vector<1x1xf32>
    %88 = arith.addf %81, %87 : vector<1x1xf32>
    %c4 = arith.constant 4 : index
    %c0_16 = arith.constant 0 : index
    %c0_17 = arith.constant 0 : index
    %89 = vector.load %arg1[%c4, %c0_16, %c0_17] : memref<6x16x16xf32, #tpu.memory_space<vmem>>, vector<1x16x16xf32>
    %90 = vector.shape_cast %89 : vector<1x16x16xf32> to vector<16x16xf32>
    %91 = vector.extract_strided_slice %90 {offsets = [1, 0], sizes = [15, 16], strides = [1, 1]} : vector<16x16xf32> to vector<15x16xf32>
    %92 = vector.extract_strided_slice %90 {offsets = [0, 0], sizes = [15, 16], strides = [1, 1]} : vector<16x16xf32> to vector<15x16xf32>
    %93 = arith.subf %91, %92 : vector<15x16xf32>
    %94 = vector.extract_strided_slice %90 {offsets = [0, 1], sizes = [16, 15], strides = [1, 1]} : vector<16x16xf32> to vector<16x15xf32>
    %95 = vector.extract_strided_slice %90 {offsets = [0, 0], sizes = [16, 15], strides = [1, 1]} : vector<16x16xf32> to vector<16x15xf32>
    %96 = arith.subf %94, %95 : vector<16x15xf32>
    %97 = arith.mulf %93, %93 : vector<15x16xf32>
    %98 = vector.shape_cast %97 : vector<15x16xf32> to vector<1x15x16xf32>
    %cst_18 = arith.constant dense<0.000000e+00> : vector<1xf32>
    %99 = vector.multi_reduction <add>, %98, %cst_18 [1, 2] : vector<1x15x16xf32> to vector<1xf32>
    %100 = vector.shape_cast %99 : vector<1xf32> to vector<1x1x1xf32>
    %101 = vector.extract %100[0, 0, 0] : f32 from vector<1x1x1xf32>
    %102 = vector.broadcast %101 : f32 to vector<1x1xf32>
    %103 = arith.addf %88, %102 : vector<1x1xf32>
    %104 = arith.mulf %96, %96 : vector<16x15xf32>
    %105 = vector.shape_cast %104 : vector<16x15xf32> to vector<1x16x15xf32>
    %cst_19 = arith.constant dense<0.000000e+00> : vector<1xf32>
    %106 = vector.multi_reduction <add>, %105, %cst_19 [1, 2] : vector<1x16x15xf32> to vector<1xf32>
    %107 = vector.shape_cast %106 : vector<1xf32> to vector<1x1x1xf32>
    %108 = vector.extract %107[0, 0, 0] : f32 from vector<1x1x1xf32>
    %109 = vector.broadcast %108 : f32 to vector<1x1xf32>
    %110 = arith.addf %103, %109 : vector<1x1xf32>
    %c5 = arith.constant 5 : index
    %c0_20 = arith.constant 0 : index
    %c0_21 = arith.constant 0 : index
    %111 = vector.load %arg1[%c5, %c0_20, %c0_21] : memref<6x16x16xf32, #tpu.memory_space<vmem>>, vector<1x16x16xf32>
    %112 = vector.shape_cast %111 : vector<1x16x16xf32> to vector<16x16xf32>
    %113 = vector.extract_strided_slice %112 {offsets = [1, 0], sizes = [15, 16], strides = [1, 1]} : vector<16x16xf32> to vector<15x16xf32>
    %114 = vector.extract_strided_slice %112 {offsets = [0, 0], sizes = [15, 16], strides = [1, 1]} : vector<16x16xf32> to vector<15x16xf32>
    %115 = arith.subf %113, %114 : vector<15x16xf32>
    %116 = vector.extract_strided_slice %112 {offsets = [0, 1], sizes = [16, 15], strides = [1, 1]} : vector<16x16xf32> to vector<16x15xf32>
    %117 = vector.extract_strided_slice %112 {offsets = [0, 0], sizes = [16, 15], strides = [1, 1]} : vector<16x16xf32> to vector<16x15xf32>
    %118 = arith.subf %116, %117 : vector<16x15xf32>
    %119 = arith.mulf %115, %115 : vector<15x16xf32>
    %120 = vector.shape_cast %119 : vector<15x16xf32> to vector<1x15x16xf32>
    %cst_22 = arith.constant dense<0.000000e+00> : vector<1xf32>
    %121 = vector.multi_reduction <add>, %120, %cst_22 [1, 2] : vector<1x15x16xf32> to vector<1xf32>
    %122 = vector.shape_cast %121 : vector<1xf32> to vector<1x1x1xf32>
    %123 = vector.extract %122[0, 0, 0] : f32 from vector<1x1x1xf32>
    %124 = vector.broadcast %123 : f32 to vector<1x1xf32>
    %125 = arith.addf %110, %124 : vector<1x1xf32>
    %126 = arith.mulf %118, %118 : vector<16x15xf32>
    %127 = vector.shape_cast %126 : vector<16x15xf32> to vector<1x16x15xf32>
    %cst_23 = arith.constant dense<0.000000e+00> : vector<1xf32>
    %128 = vector.multi_reduction <add>, %127, %cst_23 [1, 2] : vector<1x16x15xf32> to vector<1xf32>
    %129 = vector.shape_cast %128 : vector<1xf32> to vector<1x1x1xf32>
    %130 = vector.extract %129[0, 0, 0] : f32 from vector<1x1x1xf32>
    %131 = vector.broadcast %130 : f32 to vector<1x1xf32>
    %132 = arith.addf %125, %131 : vector<1x1xf32>
    %c0_24 = arith.constant 0 : index
    %c0_25 = arith.constant 0 : index
    %133 = vector.load %arg2[%c0_24, %c0_25] : memref<1x1xf32, #tpu.memory_space<vmem>>, vector<1x1xf32>
    tpu.vector_store %arg2[%c0_24, %c0_25], %132 {strides = array<i32>} : memref<1x1xf32, #tpu.memory_space<vmem>>, vector<1x1xf32>,
    return
  }
  func.func @transform_0(%arg0: i32) -> (i32, i32, i32) {
    %c0_i32 = arith.constant 0 : i32
    %c0_i32_0 = arith.constant 0 : i32
    %c0_i32_1 = arith.constant 0 : i32
    return %arg0, %c0_i32, %c0_i32_0 : i32, i32, i32
  }
  func.func @transform_1(%arg0: i32) -> (i32, i32) {
    %c0_i32 = arith.constant 0 : i32
    %c0_i32_0 = arith.constant 0 : i32
    return %arg0, %c0_i32 : i32, i32
  }
}

</mosaic_0001>

<llo_original>
// kernel: tpu_custom_call.1
$region0: #{tpu_custom_call.1}
  #allocation0 [shape = 'u32[]', space=smem, size = 0x4, offset = 0x4, fixed_abs, tag = 'smem constant byte address 0x4 - core index']
  #allocation1 [shape = 'u32[144,128]{1,0:T(1,128)}', space=vmem, size = 0x12000, scoped, tag = 'internal scratch']
  %s0 = inlined_call_operand.hbm [shape: f32[6,16,16], index: 0, kind: input, shape index: {}]
  %s1 = inlined_call_operand.hbm [shape: f32[1,1], index: 1, kind: output, shape index: {}]
  %s2 = sld [smem:[#allocation0]]
  $region18: #{tpu_custom_call.1} parent=0
    _
  %s4 = ssub.s32 1, %s2
  %s5 = scalar_select 0, %s4, %s2
  $region1: #{tpu_custom_call.1} parent=0
    #allocation2 [shape = 'u8[49152]{0}', space=vmem, size = 0xc000, scoped, tag = 'input window, operand 0, single buffered']
    #allocation3 [shape = 's32[1]{0}', space=sflag, size = 0x4, scoped, tag = 'scoped memory for tpu_custom_call.1']
    #allocation4 [shape = 's32[1]{0}', space=sflag, size = 0x4, scoped, tag = 'scoped memory for tpu_custom_call.1']
    #allocation5 [shape = 'u8[512]{0}', space=vmem, size = 0x400, scoped, tag = 'output window, operand 0, single buffered']
    %6 = vsyncpa [#allocation3], 0
    %7 = vsyncpa [#allocation4], 0
    // Predicated region
    $region2: #{tpu_custom_call.1} parent=1 // pred_check
      _
    $region3: #{tpu_custom_call.1} parent=1 // pred_check_branch
      %9 = sbr.rel (0) target = $region5
    $region4: #{tpu_custom_call.1} parent=1 // pred_region
      %s11 = ssub.s32 1536, 1536
      %12 = vsyncadd [#allocation3], %s11
      %s13 = sshll.u32 [#allocation2], 4
      %s14 = int_to_ptr.vmem [resolvable:$true] %s13
      %19 = dma.hbm_to_vmem [thread:$0]  %s0, 1536, %s14, [#allocation3], 128, 128, 8
    $region5: #{tpu_custom_call.1} parent=1 // pred_fallthru
      _
    // Predicated region
    $region6: #{tpu_custom_call.1} parent=1 // pred_check
      _
    $region7: #{tpu_custom_call.1} parent=1 // pred_check_branch
      %21 = sbr.rel (0) target = $region9
    $region8: #{tpu_custom_call.1} parent=1 // pred_region
      %22 = dma.done [#allocation3], 1536
    $region9: #{tpu_custom_call.1} parent=1 // pred_fallthru
      _
    %v23 = vld [vmem:[#allocation2] sm:$0xff]
    %v24 = vld [vmem:[#allocation2 + $0x8] sm:$0xff]
    %vm27 = vcmask 1040384
    %v28 = vrot.slane %v23, 7
    %v29 = vrot.slane %v24, 7
    %v30 = vsel %vm27, %v28, %v29
    %v33 = vsub.f32 %v23, %v28
    %v34 = vsub.f32 %v24, %v30
    %35 = vrot.lane.b32.xlu0 %v23, 1
    %v36 = vpop.permute.xlu0 %35
    %37 = vrot.lane.b32.xlu0 %v24, 1
    %v38 = vpop.permute.xlu0 %37
    %v41 = vsub.f32 %v23, %v36
    %v42 = vsub.f32 %v24, %v38
    %v43 = vmul.f32 %v33, %v33
    %v44 = vmul.f32 %v34, %v34
    %vm47 = vcmask 1046528
    %v48 = vrot.slane %v43, 1
    %v49 = vrot.slane %v44, 1
    %v50 = vsel %vm47, %v48, %v49
    %vm53 = vcmask 130048
    %v54 = vsel %vm53, %v50, 0.0
    %vm55 = vcmask 129024
    %v56 = vsel %vm55, %v49, 0.0
    %v57 = vadd.f32 %v54, %v56
    %58 = vadd.xlane.f32.xlu0 %v57
    %v59 = vpop.xlane.xlu0 %58
    %v60 = vrot.slane %v59, 4
    %v61 = vadd.f32 %v59, %v60
    %v62 = vrot.slane %v61, 2
    %v63 = vadd.f32 %v61, %v62
    %v64 = vrot.slane %v63, 1
    %v65 = vadd.f32 %v63, %v64
    %s66 = vtos %v65
    %v67 = vstv %s66
    %v68 = vadd.f32 %v67, 0.0
    %v69 = vmul.f32 %v41, %v41
    %v70 = vmul.f32 %v42, %v42
    %73 = vrot.lane.b32.xlu0 %v69, 127
    %v74 = vpop.permute.xlu0 %73
    %75 = vrot.lane.b32.xlu0 %v70, 127
    %v76 = vpop.permute.xlu0 %75
    %vm79 = vcmask 121856
    %v80 = vsel %vm79, %v74, 0.0
    %v81 = vsel %vm79, %v76, 0.0
    %v82 = vadd.f32 %v80, %v81
    %83 = vadd.xlane.f32.xlu0 %v82
    %v84 = vpop.xlane.xlu0 %83
    %v85 = vrot.slane %v84, 4
    %v86 = vadd.f32 %v84, %v85
    %v87 = vrot.slane %v86, 2
    %v88 = vadd.f32 %v86, %v87
    %v89 = vrot.slane %v88, 1
    %v90 = vadd.f32 %v88, %v89
    %s91 = vtos %v90
    %v92 = vstv %s91
    %v93 = vadd.f32 %v68, %v92
    %s94 = scalar_lea.vmem [#allocation2], 16
    %v95 = vld [vmem:[%s94] sm:$0xff]
    %v96 = vld [vmem:[%s94 + $0x8] sm:$0xff]
    %v99 = vrot.slane %v95, 7
    %v100 = vrot.slane %v96, 7
    %v101 = vsel %vm27, %v99, %v100
    %v104 = vsub.f32 %v95, %v99
    %v105 = vsub.f32 %v96, %v101
    %106 = vrot.lane.b32.xlu0 %v95, 1
    %v107 = vpop.permute.xlu0 %106
    %108 = vrot.lane.b32.xlu0 %v96, 1
    %v109 = vpop.permute.xlu0 %108
    %v112 = vsub.f32 %v95, %v107
    %v113 = vsub.f32 %v96, %v109
    %v114 = vmul.f32 %v104, %v104
    %v115 = vmul.f32 %v105, %v105
    %v118 = vrot.slane %v114, 1
    %v119 = vrot.slane %v115, 1
    %v120 = vsel %vm47, %v118, %v119
    %v123 = vsel %vm53, %v120, 0.0
    %v124 = vsel %vm55, %v119, 0.0
    %v125 = vadd.f32 %v123, %v124
    %126 = vadd.xlane.f32.xlu0 %v125
    %v127 = vpop.xlane.xlu0 %126
    %v128 = vrot.slane %v127, 4
    %v129 = vadd.f32 %v127, %v128
    %v130 = vrot.slane %v129, 2
    %v131 = vadd.f32 %v129, %v130
    %v132 = vrot.slane %v131, 1
    %v133 = vadd.f32 %v131, %v132
    %s134 = vtos %v133
    %v135 = vstv %s134
    %v136 = vadd.f32 %v93, %v135
    %v137 = vmul.f32 %v112, %v112
    %v138 = vmul.f32 %v113, %v113
    %141 = vrot.lane.b32.xlu0 %v137, 127
    %v142 = vpop.permute.xlu0 %141
    %143 = vrot.lane.b32.xlu0 %v138, 127
    %v144 = vpop.permute.xlu0 %143
    %v147 = vsel %vm79, %v142, 0.0
    %v148 = vsel %vm79, %v144, 0.0
    %v149 = vadd.f32 %v147, %v148
    %150 = vadd.xlane.f32.xlu0 %v149
    %v151 = vpop.xlane.xlu0 %150
    %v152 = vrot.slane %v151, 4
    %v153 = vadd.f32 %v151, %v152
    %v154 = vrot.slane %v153, 2
    %v155 = vadd.f32 %v153, %v154
    %v156 = vrot.slane %v155, 1
    %v157 = vadd.f32 %v155, %v156
    %s158 = vtos %v157
    %v159 = vstv %s158
    %v160 = vadd.f32 %v136, %v159
    %s161 = scalar_lea.vmem [#allocation2], 32
    %v162 = vld [vmem:[%s161] sm:$0xff]
    %v163 = vld [vmem:[%s161 + $0x8] sm:$0xff]
    %v166 = vrot.slane %v162, 7
    %v167 = vrot.slane %v163, 7
    %v168 = vsel %vm27, %v166, %v167
    %v171 = vsub.f32 %v162, %v166
    %v172 = vsub.f32 %v163, %v168
    %173 = vrot.lane.b32.xlu0 %v162, 1
    %v174 = vpop.permute.xlu0 %173
    %175 = vrot.lane.b32.xlu0 %v163, 1
    %v176 = vpop.permute.xlu0 %175
    %v179 = vsub.f32 %v162, %v174
    %v180 = vsub.f32 %v163, %v176
    %v181 = vmul.f32 %v171, %v171
    %v182 = vmul.f32 %v172, %v172
    %v185 = vrot.slane %v181, 1
    %v186 = vrot.slane %v182, 1
    %v187 = vsel %vm47, %v185, %v186
    %v190 = vsel %vm53, %v187, 0.0
    %v191 = vsel %vm55, %v186, 0.0
    %v192 = vadd.f32 %v190, %v191
    %193 = vadd.xlane.f32.xlu0 %v192
    %v194 = vpop.xlane.xlu0 %193
    %v195 = vrot.slane %v194, 4
    %v196 = vadd.f32 %v194, %v195
    %v197 = vrot.slane %v196, 2
    %v198 = vadd.f32 %v196, %v197
    %v199 = vrot.slane %v198, 1
    %v200 = vadd.f32 %v198, %v199
    %s201 = vtos %v200
    %v202 = vstv %s201
    %v203 = vadd.f32 %v160, %v202
    %v204 = vmul.f32 %v179, %v179
    %v205 = vmul.f32 %v180, %v180
    %208 = vrot.lane.b32.xlu0 %v204, 127
    %v209 = vpop.permute.xlu0 %208
    %210 = vrot.lane.b32.xlu0 %v205, 127
    %v211 = vpop.permute.xlu0 %210
    %v214 = vsel %vm79, %v209, 0.0
    %v215 = vsel %vm79, %v211, 0.0
    %v216 = vadd.f32 %v214, %v215
    %217 = vadd.xlane.f32.xlu0 %v216
    %v218 = vpop.xlane.xlu0 %217
    %v219 = vrot.slane %v218, 4
    %v220 = vadd.f32 %v218, %v219
    %v221 = vrot.slane %v220, 2
    %v222 = vadd.f32 %v220, %v221
    %v223 = vrot.slane %v222, 1
    %v224 = vadd.f32 %v222, %v223
    %s225 = vtos %v224
    %v226 = vstv %s225
    %v227 = vadd.f32 %v203, %v226
    %s228 = scalar_lea.vmem [#allocation2], 48
    %v229 = vld [vmem:[%s228] sm:$0xff]
    %v230 = vld [vmem:[%s228 + $0x8] sm:$0xff]
    %v233 = vrot.slane %v229, 7
    %v234 = vrot.slane %v230, 7
    %v235 = vsel %vm27, %v233, %v234
    %v238 = vsub.f32 %v229, %v233
    %v239 = vsub.f32 %v230, %v235
    %240 = vrot.lane.b32.xlu0 %v229, 1
    %v241 = vpop.permute.xlu0 %240
    %242 = vrot.lane.b32.xlu0 %v230, 1
    %v243 = vpop.permute.xlu0 %242
    %v246 = vsub.f32 %v229, %v241
    %v247 = vsub.f32 %v230, %v243
    %v248 = vmul.f32 %v238, %v238
    %v249 = vmul.f32 %v239, %v239
    %v252 = vrot.slane %v248, 1
    %v253 = vrot.slane %v249, 1
    %v254 = vsel %vm47, %v252, %v253
    %v257 = vsel %vm53, %v254, 0.0
    %v258 = vsel %vm55, %v253, 0.0
    %v259 = vadd.f32 %v257, %v258
    %260 = vadd.xlane.f32.xlu0 %v259
    %v261 = vpop.xlane.xlu0 %260
    %v262 = vrot.slane %v261, 4
    %v263 = vadd.f32 %v261, %v262
    %v264 = vrot.slane %v263, 2
    %v265 = vadd.f32 %v263, %v264
    %v266 = vrot.slane %v265, 1
    %v267 = vadd.f32 %v265, %v266
    %s268 = vtos %v267
    %v269 = vstv %s268
    %v270 = vadd.f32 %v227, %v269
    %v271 = vmul.f32 %v246, %v246
    %v272 = vmul.f32 %v247, %v247
    %275 = vrot.lane.b32.xlu0 %v271, 127
    %v276 = vpop.permute.xlu0 %275
    %277 = vrot.lane.b32.xlu0 %v272, 127
    %v278 = vpop.permute.xlu0 %277
    %v281 = vsel %vm79, %v276, 0.0
    %v282 = vsel %vm79, %v278, 0.0
    %v283 = vadd.f32 %v281, %v282
    %284 = vadd.xlane.f32.xlu0 %v283
    %v285 = vpop.xlane.xlu0 %284
    %v286 = vrot.slane %v285, 4
    %v287 = vadd.f32 %v285, %v286
    %v288 = vrot.slane %v287, 2
    %v289 = vadd.f32 %v287, %v288
    %v290 = vrot.slane %v289, 1
    %v291 = vadd.f32 %v289, %v290
    %s292 = vtos %v291
    %v293 = vstv %s292
    %v294 = vadd.f32 %v270, %v293
    %s295 = scalar_lea.vmem [#allocation2], 64
    %v296 = vld [vmem:[%s295] sm:$0xff]
    %v297 = vld [vmem:[%s295 + $0x8] sm:$0xff]
    %v300 = vrot.slane %v296, 7
    %v301 = vrot.slane %v297, 7
    %v302 = vsel %vm27, %v300, %v301
    %v305 = vsub.f32 %v296, %v300
    %v306 = vsub.f32 %v297, %v302
    %307 = vrot.lane.b32.xlu0 %v296, 1
    %v308 = vpop.permute.xlu0 %307
    %309 = vrot.lane.b32.xlu0 %v297, 1
    %v310 = vpop.permute.xlu0 %309
    %v313 = vsub.f32 %v296, %v308
    %v314 = vsub.f32 %v297, %v310
    %v315 = vmul.f32 %v305, %v305
    %v316 = vmul.f32 %v306, %v306
    %v319 = vrot.slane %v315, 1
    %v320 = vrot.slane %v316, 1
    %v321 = vsel %vm47, %v319, %v320
    %v324 = vsel %vm53, %v321, 0.0
    %v325 = vsel %vm55, %v320, 0.0
    %v326 = vadd.f32 %v324, %v325
    %327 = vadd.xlane.f32.xlu0 %v326
    %v328 = vpop.xlane.xlu0 %327
    %v329 = vrot.slane %v328, 4
    %v330 = vadd.f32 %v328, %v329
    %v331 = vrot.slane %v330, 2
    %v332 = vadd.f32 %v330, %v331
    %v333 = vrot.slane %v332, 1
    %v334 = vadd.f32 %v332, %v333
    %s335 = vtos %v334
    %v336 = vstv %s335
    %v337 = vadd.f32 %v294, %v336
    %v338 = vmul.f32 %v313, %v313
    %v339 = vmul.f32 %v314, %v314
    %342 = vrot.lane.b32.xlu0 %v338, 127
    %v343 = vpop.permute.xlu0 %342
    %344 = vrot.lane.b32.xlu0 %v339, 127
    %v345 = vpop.permute.xlu0 %344
    %v348 = vsel %vm79, %v343, 0.0
    %v349 = vsel %vm79, %v345, 0.0
    %v350 = vadd.f32 %v348, %v349
    %351 = vadd.xlane.f32.xlu0 %v350
    %v352 = vpop.xlane.xlu0 %351
    %v353 = vrot.slane %v352, 4
    %v354 = vadd.f32 %v352, %v353
    %v355 = vrot.slane %v354, 2
    %v356 = vadd.f32 %v354, %v355
    %v357 = vrot.slane %v356, 1
    %v358 = vadd.f32 %v356, %v357
    %s359 = vtos %v358
    %v360 = vstv %s359
    %v361 = vadd.f32 %v337, %v360
    %s362 = scalar_lea.vmem [#allocation2], 80
    %v363 = vld [vmem:[%s362] sm:$0xff]
    %v364 = vld [vmem:[%s362 + $0x8] sm:$0xff]
    %v367 = vrot.slane %v363, 7
    %v368 = vrot.slane %v364, 7
    %v369 = vsel %vm27, %v367, %v368
    %v372 = vsub.f32 %v363, %v367
    %v373 = vsub.f32 %v364, %v369
    %374 = vrot.lane.b32.xlu0 %v363, 1
    %v375 = vpop.permute.xlu0 %374
    %376 = vrot.lane.b32.xlu0 %v364, 1
    %v377 = vpop.permute.xlu0 %376
    %v380 = vsub.f32 %v363, %v375
    %v381 = vsub.f32 %v364, %v377
    %v382 = vmul.f32 %v372, %v372
    %v383 = vmul.f32 %v373, %v373
    %v386 = vrot.slane %v382, 1
    %v387 = vrot.slane %v383, 1
    %v388 = vsel %vm47, %v386, %v387
    %v391 = vsel %vm53, %v388, 0.0
    %v392 = vsel %vm55, %v387, 0.0
    %v393 = vadd.f32 %v391, %v392
    %394 = vadd.xlane.f32.xlu0 %v393
    %v395 = vpop.xlane.xlu0 %394
    %v396 = vrot.slane %v395, 4
    %v397 = vadd.f32 %v395, %v396
    %v398 = vrot.slane %v397, 2
    %v399 = vadd.f32 %v397, %v398
    %v400 = vrot.slane %v399, 1
    %v401 = vadd.f32 %v399, %v400
    %s402 = vtos %v401
    %v403 = vstv %s402
    %v404 = vadd.f32 %v361, %v403
    %v405 = vmul.f32 %v380, %v380
    %v406 = vmul.f32 %v381, %v381
    %409 = vrot.lane.b32.xlu0 %v405, 127
    %v410 = vpop.permute.xlu0 %409
    %411 = vrot.lane.b32.xlu0 %v406, 127
    %v412 = vpop.permute.xlu0 %411
    %v415 = vsel %vm79, %v410, 0.0
    %v416 = vsel %vm79, %v412, 0.0
    %v417 = vadd.f32 %v415, %v416
    %418 = vadd.xlane.f32.xlu0 %v417
    %v419 = vpop.xlane.xlu0 %418
    %v420 = vrot.slane %v419, 4
    %v421 = vadd.f32 %v419, %v420
    %v422 = vrot.slane %v421, 2
    %v423 = vadd.f32 %v421, %v422
    %v424 = vrot.slane %v423, 1
    %v425 = vadd.f32 %v423, %v424
    %s426 = vtos %v425
    %v427 = vstv %s426
    %v428 = vadd.f32 %v404, %v427
    %vm429 = vcmask 0
    %430 = vst.msk [vmem:[#allocation5] sm:$0x1] %vm429, %v428
    // Predicated region
    $region10: #{tpu_custom_call.1} parent=1 // pred_check
      _
    $region11: #{tpu_custom_call.1} parent=1 // pred_check_branch
      %432 = sbr.rel (0) target = $region13
    $region12: #{tpu_custom_call.1} parent=1 // pred_region
      %s434 = ssub.s32 16, 16
      %435 = vsyncadd [#allocation4], %s434
      %s437 = sshll.u32 [#allocation5], 4
      %s438 = int_to_ptr.vmem [resolvable:$true] %s437
      %440 = dma.vmem_to_hbm [thread:$0]  %s438, 16, %s1, [#allocation4]
    $region13: #{tpu_custom_call.1} parent=1 // pred_fallthru
      _
    // Predicated region
    $region14: #{tpu_custom_call.1} parent=1 // pred_check
      _
    $region15: #{tpu_custom_call.1} parent=1 // pred_check_branch
      %442 = sbr.rel (0) target = $region17
    $region16: #{tpu_custom_call.1} parent=1 // pred_region
      %443 = dma.done [#allocation4], 16
    $region17: #{tpu_custom_call.1} parent=1 // pred_fallthru
      _
    %444 = vsyncpa [#allocation3], 1
    %445 = vsyncpa [#allocation4], 1

</llo_original>
